<compile_context>
chip_gen: v7x
topology: tpu7x:2x2x1
jax: 0.10.0
libtpu: 0.0.40
codegen_flags: <defaults>
</compile_context>

<pallas_src>
import functools

import jax
import jax.numpy as jnp
from jax.experimental import pallas as pl
from jax.experimental.pallas import tpu as pltpu


def _choose_edge_tile(E: int, D: int, itemsize: int) -> int:
    """Edges per grid step: ~2 MiB of (src + dst) input, multiple of 128."""
    target_bytes = 2 * 1024 * 1024
    tile = target_bytes // max(1, 2 * D * itemsize)
    tile = int(max(128, min(16384, tile)))
    tile = (tile // 128) * 128
    e_pad = ((max(E, 1) + 127) // 128) * 128
    # Never pad a small edge set up to a huge single tile.
    tile = min(tile, e_pad)
    # Keep >= 2 grid steps when there is enough work so both v7x TensorCores
    # get a share (dimension_semantics=("parallel",)). No effect on v5e/v6e.
    if tile == e_pad and e_pad >= 256 and e_pad * 2 * D * itemsize > (1 << 20):
        tile = ((e_pad // 2 + 127) // 128) * 128
    return tile


def _dot_edge_kernel(zs_ref, zd_ref, o_ref, *, apply_sigmoid: bool):
    # zs_ref, zd_ref: (EDGE_TILE, D) row-major VMEM tiles (edges on sublanes,
    #                 features on lanes — contiguous DMA per tile).
    # o_ref:          (EDGE_TILE, 1) output tile.
    prod = zs_ref[...] * zd_ref[...]                                # input dtype
    s = jnp.sum(prod.astype(jnp.float32), axis=-1, keepdims=True)  # f32 lane reduce
    if apply_sigmoid:
        s = jax.nn.sigmoid(s)
    o_ref[...] = s.astype(o_ref.dtype)


def dot_edge_decoder(z: jax.Array, edge: jax.Array, sigmoid: bool = True) -> jax.Array:
    """Pallas implementation of DotEdgeDecoder.forward(z, edge, sigmoid).

    z:    [N, D] float array of node embeddings.
    edge: [2, E] int array of (src, dst) node indices.
    Returns: [E] float32 array.
    """
    assert z.ndim == 2 and edge.ndim == 2 and edge.shape[0] == 2
    N, D = z.shape
    E = edge.shape[1]
    itemsize = jnp.dtype(z.dtype).itemsize

    tile = _choose_edge_tile(E, D, itemsize)
    num_tiles = max(1, pl.cdiv(E, tile))
    E_pad = num_tiles * tile

    # Pad the (cheap) index array, not the gathered (E, D) arrays. Index 0 is a
    # valid node; padded rows produce garbage that is sliced off at the end.
    edge = edge.astype(jnp.int32)
    if E_pad != E:
        edge = jnp.pad(edge, ((0, 0), (0, E_pad - E)))

    # Glue: data-dependent row gather (XLA), consumed row-major — no transpose.
    z_src = jnp.take(z, edge[0], axis=0)  # (E_pad, D)
    z_dst = jnp.take(z, edge[1], axis=0)  # (E_pad, D)

    kernel = functools.partial(_dot_edge_kernel, apply_sigmoid=sigmoid)

    out = pl.pallas_call(
        kernel,
        out_shape=jax.ShapeDtypeStruct((E_pad, 1), jnp.float32),
        grid_spec=pltpu.PrefetchScalarGridSpec(
            num_scalar_prefetch=0,
            grid=(num_tiles,),
            in_specs=[
                pl.BlockSpec((tile, D), lambda i: (i, 0)),
                pl.BlockSpec((tile, D), lambda i: (i, 0)),
            ],
            out_specs=pl.BlockSpec((tile, 1), lambda i: (i, 0)),
        ),
        compiler_params=pltpu.CompilerParams(
            dimension_semantics=("parallel",),       # shard edge tiles across TCs (v7x)
            vmem_limit_bytes=32 * 1024 * 1024,       # headroom; safe on v5e/v6e/v7x
        ),
    )(z_src, z_dst)

    return out.reshape(E_pad)[:E]


def _reference(z, edge, sigmoid=True):
    x = z[edge[0]] * z[edge[1]]
    x = x.sum(-1)
    return jax.nn.sigmoid(x) if sigmoid else x


if __name__ == "__main__":
    key = jax.random.PRNGKey(0)

    # Case 1: small graph (single edge tile).
    k_z, k_e = jax.random.split(key)
    N, D, E = 16, 32, 10
    z = jax.random.normal(k_z, (N, D), dtype=jnp.float32)
    edge = jax.random.randint(k_e, (2, E), minval=0, maxval=N, dtype=jnp.int32)

    out = jax.block_until_ready(dot_edge_decoder(z, edge, sigmoid=True))
    ref = _reference(z, edge, sigmoid=True)
    assert out.shape == (E,)
    assert jnp.allclose(out, ref, atol=1e-5, rtol=1e-5), (out, ref)

    out_logits = jax.block_until_ready(dot_edge_decoder(z, edge, sigmoid=False))
    ref_logits = _reference(z, edge, sigmoid=False)
    assert jnp.allclose(out_logits, ref_logits, atol=1e-5, rtol=1e-5)

    # Case 2: larger edge set exercising padding + final slice.
    k_z2, k_e2 = jax.random.split(jax.random.fold_in(key, 1))
    N2, D2, E2 = 64, 32, 1200
    z2 = jax.random.normal(k_z2, (N2, D2), dtype=jnp.float32)
    edge2 = jax.random.randint(k_e2, (2, E2), minval=0, maxval=N2, dtype=jnp.int32)

    out2 = jax.block_until_ready(dot_edge_decoder(z2, edge2, sigmoid=True))
    ref2 = _reference(z2, edge2, sigmoid=True)
    assert out2.shape == (E2,)
    assert jnp.allclose(out2, ref2, atol=1e-5, rtol=1e-5)

    # Case 3: edge count large enough to trigger the multi-tile (>=2 grid step) path.
    k_z3, k_e3 = jax.random.split(jax.random.fold_in(key, 2))
    N3, D3, E3 = 128, 32, 5000
    z3 = jax.random.normal(k_z3, (N3, D3), dtype=jnp.float32)
    edge3 = jax.random.randint(k_e3, (2, E3), minval=0, maxval=N3, dtype=jnp.int32)

    out3 = jax.block_until_ready(dot_edge_decoder(z3, edge3, sigmoid=True))
    ref3 = _reference(z3, edge3, sigmoid=True)
    assert out3.shape == (E3,)
    assert jnp.allclose(out3, ref3, atol=1e-5, rtol=1e-5)

    print("KERNEL_OK")
</pallas_src>

<mosaic_0001>
module attributes {stable_mosaic.version = 11 : i64} {
  func.func @_dot_edge_kernel(%arg0: i32, %arg1: memref<128x32xf32, #tpu.memory_space<vmem>>, %arg2: memref<128x32xf32, #tpu.memory_space<vmem>>, %arg3: memref<128x1xf32, #tpu.memory_space<vmem>>) attributes {dimension_semantics = [#tpu.dimension_semantics<parallel>], iteration_bounds = array<i64: 1>, scalar_prefetch = 0 : i64, scratch_operands = 0 : i64, tpu.core_type = #tpu.core_type<tc>, window_params = [{transform_indices = @transform_0, window_bounds = array<i64: 128, 32>}, {transform_indices = @transform_1, window_bounds = array<i64: 128, 32>}, {transform_indices = @transform_2, window_bounds = array<i64: 128, 1>}]} {
    %c0 = arith.constant 0 : index
    %c0_0 = arith.constant 0 : index
    %0 = vector.load %arg1[%c0, %c0_0] : memref<128x32xf32, #tpu.memory_space<vmem>>, vector<128x32xf32>
    %c0_1 = arith.constant 0 : index
    %c0_2 = arith.constant 0 : index
    %1 = vector.load %arg2[%c0_1, %c0_2] : memref<128x32xf32, #tpu.memory_space<vmem>>, vector<128x32xf32>
    %2 = arith.mulf %0, %1 : vector<128x32xf32>
    %cst = arith.constant dense<0.000000e+00> : vector<128xf32>
    %3 = vector.multi_reduction <add>, %2, %cst [1] : vector<128x32xf32> to vector<128xf32>
    %4 = vector.shape_cast %3 : vector<128xf32> to vector<128x1xf32>
    %5 = arith.negf %4 : vector<128x1xf32>
    %6 = math.exp %5 : vector<128x1xf32>
    %cst_3 = arith.constant 1.000000e+00 : f32
    %7 = vector.broadcast %cst_3 : f32 to vector<128x1xf32>
    %8 = arith.addf %7, %6 : vector<128x1xf32>
    %9 = arith.divf %7, %8 : vector<128x1xf32>
    %c0_4 = arith.constant 0 : index
    %c0_5 = arith.constant 0 : index
    %10 = vector.load %arg3[%c0_4, %c0_5] : memref<128x1xf32, #tpu.memory_space<vmem>>, vector<128x1xf32>
    tpu.vector_store %arg3[%c0_4, %c0_5], %9 {strides = array<i32>} : memref<128x1xf32, #tpu.memory_space<vmem>>, vector<128x1xf32>,
    return
  }
  func.func @transform_0(%arg0: i32) -> (i32, i32) {
    %c0_i32 = arith.constant 0 : i32
    %c0_i32_0 = arith.constant 0 : i32
    return %arg0, %c0_i32 : i32, i32
  }
  func.func @transform_1(%arg0: i32) -> (i32, i32) {
    %c0_i32 = arith.constant 0 : i32
    %c0_i32_0 = arith.constant 0 : i32
    return %arg0, %c0_i32 : i32, i32
  }
  func.func @transform_2(%arg0: i32) -> (i32, i32) {
    %c0_i32 = arith.constant 0 : i32
    %c0_i32_0 = arith.constant 0 : i32
    return %arg0, %c0_i32 : i32, i32
  }
}

</mosaic_0001>

<llo_original>
// kernel: tpu_custom_call.1
$region0: #{tpu_custom_call.1}
  #allocation0 [shape = 'u32[]', space=smem, size = 0x4, offset = 0x4, fixed_abs, tag = 'smem constant byte address 0x4 - core index']
  #allocation1 [shape = 'u32[144,128]{1,0:T(1,128)}', space=vmem, size = 0x12000, scoped, tag = 'internal scratch']
  %s0 = inlined_call_operand.vmem [shape: f32[128,32], index: 0, kind: input, shape index: {}]
  %s1 = inlined_call_operand.vmem [shape: f32[128,32], index: 1, kind: input, shape index: {}]
  %s2 = inlined_call_operand.vmem [shape: f32[128,1], index: 2, kind: output, shape index: {}]
  %s3 = sld [smem:[#allocation0]]
  $region18: #{tpu_custom_call.1} parent=0
    _
  %s5 = ssub.s32 1, %s3
  %s6 = scalar_select 0, %s5, %s3
  // Predicated region
  $region2: #{tpu_custom_call.1} parent=0 // pred_check
    _
  $region3: #{tpu_custom_call.1} parent=0 // pred_check_branch
    %8 = sbr.rel (0) target = $region5
  $region4: #{tpu_custom_call.1} parent=0 // pred_region
    _
  $region5: #{tpu_custom_call.1} parent=0 // pred_fallthru
    _
  // Predicated region
  $region6: #{tpu_custom_call.1} parent=0 // pred_check
    _
  $region7: #{tpu_custom_call.1} parent=0 // pred_check_branch
    %10 = sbr.rel (0) target = $region9
  $region8: #{tpu_custom_call.1} parent=0 // pred_region
    _
  $region9: #{tpu_custom_call.1} parent=0 // pred_fallthru
    _
  %v11 = vld [vmem:[%s0] sm:$0xff]
  %v12 = vld [vmem:[%s0 + $0x8] sm:$0xff]
  %v13 = vld [vmem:[%s0 + $0x10] sm:$0xff]
  %v14 = vld [vmem:[%s0 + $0x18] sm:$0xff]
  %v15 = vld [vmem:[%s0 + $0x20] sm:$0xff]
  %v16 = vld [vmem:[%s0 + $0x28] sm:$0xff]
  %v17 = vld [vmem:[%s0 + $0x30] sm:$0xff]
  %v18 = vld [vmem:[%s0 + $0x38] sm:$0xff]
  %v19 = vld [vmem:[%s0 + $0x40] sm:$0xff]
  %v20 = vld [vmem:[%s0 + $0x48] sm:$0xff]
  %v21 = vld [vmem:[%s0 + $0x50] sm:$0xff]
  %v22 = vld [vmem:[%s0 + $0x58] sm:$0xff]
  %v23 = vld [vmem:[%s0 + $0x60] sm:$0xff]
  %v24 = vld [vmem:[%s0 + $0x68] sm:$0xff]
  %v25 = vld [vmem:[%s0 + $0x70] sm:$0xff]
  %v26 = vld [vmem:[%s0 + $0x78] sm:$0xff]
  %v27 = vld [vmem:[%s1] sm:$0xff]
  %v28 = vld [vmem:[%s1 + $0x8] sm:$0xff]
  %v29 = vld [vmem:[%s1 + $0x10] sm:$0xff]
  %v30 = vld [vmem:[%s1 + $0x18] sm:$0xff]
  %v31 = vld [vmem:[%s1 + $0x20] sm:$0xff]
  %v32 = vld [vmem:[%s1 + $0x28] sm:$0xff]
  %v33 = vld [vmem:[%s1 + $0x30] sm:$0xff]
  %v34 = vld [vmem:[%s1 + $0x38] sm:$0xff]
  %v35 = vld [vmem:[%s1 + $0x40] sm:$0xff]
  %v36 = vld [vmem:[%s1 + $0x48] sm:$0xff]
  %v37 = vld [vmem:[%s1 + $0x50] sm:$0xff]
  %v38 = vld [vmem:[%s1 + $0x58] sm:$0xff]
  %v39 = vld [vmem:[%s1 + $0x60] sm:$0xff]
  %v40 = vld [vmem:[%s1 + $0x68] sm:$0xff]
  %v41 = vld [vmem:[%s1 + $0x70] sm:$0xff]
  %v42 = vld [vmem:[%s1 + $0x78] sm:$0xff]
  %v43 = vmul.f32 %v11, %v27
  %v44 = vmul.f32 %v12, %v28
  %v45 = vmul.f32 %v13, %v29
  %v46 = vmul.f32 %v14, %v30
  %v47 = vmul.f32 %v15, %v31
  %v48 = vmul.f32 %v16, %v32
  %v49 = vmul.f32 %v17, %v33
  %v50 = vmul.f32 %v18, %v34
  %v51 = vmul.f32 %v19, %v35
  %v52 = vmul.f32 %v20, %v36
  %v53 = vmul.f32 %v21, %v37
  %v54 = vmul.f32 %v22, %v38
  %v55 = vmul.f32 %v23, %v39
  %v56 = vmul.f32 %v24, %v40
  %v57 = vmul.f32 %v25, %v41
  %v58 = vmul.f32 %v26, %v42
  %vm59 = vcmask 261120
  %v60 = vsel %vm59, %v43, 0.0
  %61 = vadd.xlane.f32.xlu0 %v60
  %v62 = vpop.xlane.xlu0 %61
  %v63 = vsel %vm59, %v44, 0.0
  %64 = vadd.xlane.f32.xlu0 %v63
  %v65 = vpop.xlane.xlu0 %64
  %v66 = vsel %vm59, %v45, 0.0
  %67 = vadd.xlane.f32.xlu0 %v66
  %v68 = vpop.xlane.xlu0 %67
  %v69 = vsel %vm59, %v46, 0.0
  %70 = vadd.xlane.f32.xlu0 %v69
  %v71 = vpop.xlane.xlu0 %70
  %v72 = vsel %vm59, %v47, 0.0
  %73 = vadd.xlane.f32.xlu0 %v72
  %v74 = vpop.xlane.xlu0 %73
  %v75 = vsel %vm59, %v48, 0.0
  %76 = vadd.xlane.f32.xlu0 %v75
  %v77 = vpop.xlane.xlu0 %76
  %v78 = vsel %vm59, %v49, 0.0
  %79 = vadd.xlane.f32.xlu0 %v78
  %v80 = vpop.xlane.xlu0 %79
  %v81 = vsel %vm59, %v50, 0.0
  %82 = vadd.xlane.f32.xlu0 %v81
  %v83 = vpop.xlane.xlu0 %82
  %v84 = vsel %vm59, %v51, 0.0
  %85 = vadd.xlane.f32.xlu0 %v84
  %v86 = vpop.xlane.xlu0 %85
  %v87 = vsel %vm59, %v52, 0.0
  %88 = vadd.xlane.f32.xlu0 %v87
  %v89 = vpop.xlane.xlu0 %88
  %v90 = vsel %vm59, %v53, 0.0
  %91 = vadd.xlane.f32.xlu0 %v90
  %v92 = vpop.xlane.xlu0 %91
  %v93 = vsel %vm59, %v54, 0.0
  %94 = vadd.xlane.f32.xlu0 %v93
  %v95 = vpop.xlane.xlu0 %94
  %v96 = vsel %vm59, %v55, 0.0
  %97 = vadd.xlane.f32.xlu0 %v96
  %v98 = vpop.xlane.xlu0 %97
  %v99 = vsel %vm59, %v56, 0.0
  %100 = vadd.xlane.f32.xlu0 %v99
  %v101 = vpop.xlane.xlu0 %100
  %v102 = vsel %vm59, %v57, 0.0
  %103 = vadd.xlane.f32.xlu0 %v102
  %v104 = vpop.xlane.xlu0 %103
  %v105 = vsel %vm59, %v58, 0.0
  %106 = vadd.xlane.f32.xlu0 %v105
  %v107 = vpop.xlane.xlu0 %106
  %v108 = vxor.u32 %v62, 2147483648
  %v109 = vxor.u32 %v65, 2147483648
  %v110 = vxor.u32 %v68, 2147483648
  %v111 = vxor.u32 %v71, 2147483648
  %v112 = vxor.u32 %v74, 2147483648
  %v113 = vxor.u32 %v77, 2147483648
  %v114 = vxor.u32 %v80, 2147483648
  %v115 = vxor.u32 %v83, 2147483648
  %v116 = vxor.u32 %v86, 2147483648
  %v117 = vxor.u32 %v89, 2147483648
  %v118 = vxor.u32 %v92, 2147483648
  %v119 = vxor.u32 %v95, 2147483648
  %v120 = vxor.u32 %v98, 2147483648
  %v121 = vxor.u32 %v101, 2147483648
  %v122 = vxor.u32 %v104, 2147483648
  %v123 = vxor.u32 %v107, 2147483648
  %v124 = vmul.f32 %v108, 1.442695
  %v125 = vpow.pop %v124
  %v126 = vmul.f32 %v109, 1.442695
  %v127 = vpow.pop %v126
  %v128 = vmul.f32 %v110, 1.442695
  %v129 = vpow.pop %v128
  %v130 = vmul.f32 %v111, 1.442695
  %v131 = vpow.pop %v130
  %v132 = vmul.f32 %v112, 1.442695
  %v133 = vpow.pop %v132
  %v134 = vmul.f32 %v113, 1.442695
  %v135 = vpow.pop %v134
  %v136 = vmul.f32 %v114, 1.442695
  %v137 = vpow.pop %v136
  %v138 = vmul.f32 %v115, 1.442695
  %v139 = vpow.pop %v138
  %v140 = vmul.f32 %v116, 1.442695
  %v141 = vpow.pop %v140
  %v142 = vmul.f32 %v117, 1.442695
  %v143 = vpow.pop %v142
  %v144 = vmul.f32 %v118, 1.442695
  %v145 = vpow.pop %v144
  %v146 = vmul.f32 %v119, 1.442695
  %v147 = vpow.pop %v146
  %v148 = vmul.f32 %v120, 1.442695
  %v149 = vpow.pop %v148
  %v150 = vmul.f32 %v121, 1.442695
  %v151 = vpow.pop %v150
  %v152 = vmul.f32 %v122, 1.442695
  %v153 = vpow.pop %v152
  %v154 = vmul.f32 %v123, 1.442695
  %v155 = vpow.pop %v154
  %v156 = vadd.f32 %v125, 1.0
  %v157 = vadd.f32 %v127, 1.0
  %v158 = vadd.f32 %v129, 1.0
  %v159 = vadd.f32 %v131, 1.0
  %v160 = vadd.f32 %v133, 1.0
  %v161 = vadd.f32 %v135, 1.0
  %v162 = vadd.f32 %v137, 1.0
  %v163 = vadd.f32 %v139, 1.0
  %v164 = vadd.f32 %v141, 1.0
  %v165 = vadd.f32 %v143, 1.0
  %v166 = vadd.f32 %v145, 1.0
  %v167 = vadd.f32 %v147, 1.0
  %v168 = vadd.f32 %v149, 1.0
  %v169 = vadd.f32 %v151, 1.0
  %v170 = vadd.f32 %v153, 1.0
  %v171 = vadd.f32 %v155, 1.0
  %v172 = vrcp.pop %v156
  %v173 = vmul.f32 1.0, %v172
  %v174 = vrcp.pop %v157
  %v175 = vmul.f32 1.0, %v174
  %v176 = vrcp.pop %v158
  %v177 = vmul.f32 1.0, %v176
  %v178 = vrcp.pop %v159
  %v179 = vmul.f32 1.0, %v178
  %v180 = vrcp.pop %v160
  %v181 = vmul.f32 1.0, %v180
  %v182 = vrcp.pop %v161
  %v183 = vmul.f32 1.0, %v182
  %v184 = vrcp.pop %v162
  %v185 = vmul.f32 1.0, %v184
  %v186 = vrcp.pop %v163
  %v187 = vmul.f32 1.0, %v186
  %v188 = vrcp.pop %v164
  %v189 = vmul.f32 1.0, %v188
  %v190 = vrcp.pop %v165
  %v191 = vmul.f32 1.0, %v190
  %v192 = vrcp.pop %v166
  %v193 = vmul.f32 1.0, %v192
  %v194 = vrcp.pop %v167
  %v195 = vmul.f32 1.0, %v194
  %v196 = vrcp.pop %v168
  %v197 = vmul.f32 1.0, %v196
  %v198 = vrcp.pop %v169
  %v199 = vmul.f32 1.0, %v198
  %v200 = vrcp.pop %v170
  %v201 = vmul.f32 1.0, %v200
  %v202 = vrcp.pop %v171
  %v203 = vmul.f32 1.0, %v202
  %vm204 = vcmask 7168
  %205 = vst.msk [vmem:[%s2] sm:$0xff] %vm204, %v173
  %206 = vst.msk [vmem:[%s2 + $0x8] sm:$0xff] %vm204, %v175
  %207 = vst.msk [vmem:[%s2 + $0x10] sm:$0xff] %vm204, %v177
  %208 = vst.msk [vmem:[%s2 + $0x18] sm:$0xff] %vm204, %v179
  %209 = vst.msk [vmem:[%s2 + $0x20] sm:$0xff] %vm204, %v181
  %210 = vst.msk [vmem:[%s2 + $0x28] sm:$0xff] %vm204, %v183
  %211 = vst.msk [vmem:[%s2 + $0x30] sm:$0xff] %vm204, %v185
  %212 = vst.msk [vmem:[%s2 + $0x38] sm:$0xff] %vm204, %v187
  %213 = vst.msk [vmem:[%s2 + $0x40] sm:$0xff] %vm204, %v189
  %214 = vst.msk [vmem:[%s2 + $0x48] sm:$0xff] %vm204, %v191
  %215 = vst.msk [vmem:[%s2 + $0x50] sm:$0xff] %vm204, %v193
  %216 = vst.msk [vmem:[%s2 + $0x58] sm:$0xff] %vm204, %v195
  %217 = vst.msk [vmem:[%s2 + $0x60] sm:$0xff] %vm204, %v197
  %218 = vst.msk [vmem:[%s2 + $0x68] sm:$0xff] %vm204, %v199
  %219 = vst.msk [vmem:[%s2 + $0x70] sm:$0xff] %vm204, %v201
  %220 = vst.msk [vmem:[%s2 + $0x78] sm:$0xff] %vm204, %v203
  // Predicated region
  $region10: #{tpu_custom_call.1} parent=0 // pred_check
    _
  $region11: #{tpu_custom_call.1} parent=0 // pred_check_branch
    %222 = sbr.rel (0) target = $region13
  $region12: #{tpu_custom_call.1} parent=0 // pred_region
    _
  $region13: #{tpu_custom_call.1} parent=0 // pred_fallthru
    _
  // Predicated region
  $region14: #{tpu_custom_call.1} parent=0 // pred_check
    _
  $region15: #{tpu_custom_call.1} parent=0 // pred_check_branch
    %224 = sbr.rel (0) target = $region17
  $region16: #{tpu_custom_call.1} parent=0 // pred_region
    _
  $region17: #{tpu_custom_call.1} parent=0 // pred_fallthru
    _

</llo_original>
